<compile_context>
chip_gen: v7x
topology: tpu7x:2x2x1
jax: 0.10.0
libtpu: 0.0.40
codegen_flags: <defaults>
</compile_context>

<pallas_src>
import jax
import jax.numpy as jnp
from jax import lax
from jax.experimental import pallas as pl
from jax.experimental.pallas import tpu as pltpu


def make_policy_kernel(use_bf16_matmul: bool):
    def policy_kernel(x_ref, w1_ref, b1_ref, w2_ref, b2_ref,
                      wh_ref, bh_ref, out_ref):
        x = x_ref[...]          # (TB, 3)
        w1 = w1_ref[...]        # (3, 128)

        # Hidden layer 1 on the VPU: 3 broadcast multiply-adds instead of a
        # K=3 (mostly padding) MXU matmul.
        h1 = (x[:, 0:1] * w1[0:1, :]
              + x[:, 1:2] * w1[1:2, :]
              + x[:, 2:3] * w1[2:3, :]
              + b1_ref[...])
        h1 = jnp.maximum(h1, 0.0)                       # (TB, 128)

        # Hidden layer 2 on the MXU: (TB,128) @ (128,128), f32 accumulate.
        lhs = h1.astype(jnp.bfloat16) if use_bf16_matmul else h1
        h2 = jnp.dot(lhs, w2_ref[...], preferred_element_type=jnp.float32)
        h2 = jnp.maximum(h2 + b2_ref[...], 0.0)         # (TB, 128)

        # Fused heads: one (TB,128) @ (128,2) matmul + one tanh on (TB,2).
        t = jnp.tanh(
            jnp.dot(h2, wh_ref[...], preferred_element_type=jnp.float32)
            + bh_ref[...])                              # (TB, 2)

        # col 0 -> mean = tanh * 2 ; col 1 -> std = tanh ** 2
        col = lax.broadcasted_iota(jnp.int32, t.shape, 1)
        out_ref[...] = jnp.where(col == 0, 2.0 * t, t * t)

    return policy_kernel


def policy_forward(x, params, *, block_b=512, use_bf16_matmul=False):
    """x: (B, 3) float32 -> (mean (B,1), std (B,1))."""
    B = x.shape[0]
    w1, b1, w2, b2, wm, bm, ws, bs = params

    # Fuse head weights/biases: (128,2) / (1,2).
    w_heads = jnp.concatenate([wm, ws], axis=1)
    b_heads = jnp.concatenate([bm, bs], axis=1)
    w2_in = w2.astype(jnp.bfloat16) if use_bf16_matmul else w2

    # Batch tiling: one block if B <= block_b, else block_b-row tiles
    # (block_b must stay a multiple of 8 for sublane alignment).
    TB = block_b if B > block_b else B
    n_blocks = pl.cdiv(B, TB)
    Bp = n_blocks * TB
    if Bp != B:
        x = jnp.pad(x, ((0, Bp - B), (0, 0)))

    def resident(shape):
        # Weights/biases: same block every grid step -> stay VMEM-resident.
        return pl.BlockSpec(shape, lambda i: (0,) * len(shape))

    out = pl.pallas_call(
        make_policy_kernel(use_bf16_matmul),
        grid=(n_blocks,),
        in_specs=[
            pl.BlockSpec((TB, 3), lambda i: (i, 0)),     # x, batch-tiled
            resident(w1.shape), resident(b1.shape),
            resident(w2_in.shape), resident(b2.shape),
            resident(w_heads.shape), resident(b_heads.shape),
        ],
        out_specs=pl.BlockSpec((TB, 2), lambda i: (i, 0)),
        out_shape=jax.ShapeDtypeStruct((Bp, 2), jnp.float32),
        compiler_params=pltpu.CompilerParams(
            dimension_semantics=("parallel",)),
    )(x, w1, b1, w2_in, b2, w_heads, b_heads)

    mean = out[:B, 0:1]
    std = out[:B, 1:2]
    return mean, std


def init_params(key):
    """Deterministic synthetic weights matching the PyTorch module shapes.

    Weights are stored transposed: (in_features, out_features)."""
    keys = jax.random.split(key, 8)

    def lin(kw, kb, fan_in, fan_out):
        # PyTorch default init: U(-1/sqrt(fan_in), 1/sqrt(fan_in))
        bound = 1.0 / jnp.sqrt(jnp.float32(fan_in))
        w = jax.random.uniform(kw, (fan_in, fan_out), jnp.float32, -bound, bound)
        b = jax.random.uniform(kb, (1, fan_out), jnp.float32, -bound, bound)
        return w, b

    w1, b1 = lin(keys[0], keys[1], 3, 128)
    w2, b2 = lin(keys[2], keys[3], 128, 128)
    wm, bm = lin(keys[4], keys[5], 128, 1)
    ws, bs = lin(keys[6], keys[7], 128, 1)
    return (w1, b1, w2, b2, wm, bm, ws, bs)


def policy_forward_ref(x, params):
    """Pure-JAX reference for correctness checking."""
    w1, b1, w2, b2, wm, bm, ws, bs = params
    h = jnp.maximum(x @ w1 + b1, 0.0)
    h = jnp.maximum(h @ w2 + b2, 0.0)
    mean = jnp.tanh(h @ wm + bm) * 2.0
    std = jnp.tanh(h @ ws + bs) ** 2
    return mean, std


if __name__ == "__main__":
    key = jax.random.PRNGKey(0)
    k_params, k_x, k_x2 = jax.random.split(key, 3)

    params = init_params(k_params)

    # Small batch (grid of 1 block), f32 path: bit-tight check vs reference.
    B = 8
    x = jax.random.normal(k_x, (B, 3), jnp.float32)
    mean, std = policy_forward(x, params)
    jax.block_until_ready((mean, std))
    mean_ref, std_ref = policy_forward_ref(x, params)
    assert mean.shape == (B, 1) and std.shape == (B, 1)
    assert jnp.allclose(mean, mean_ref, atol=1e-5, rtol=1e-5)
    assert jnp.allclose(std, std_ref, atol=1e-5, rtol=1e-5)

    # Non-divisible batch exercising the batch grid + padding path (TB=8).
    B2 = 13
    x2 = jax.random.normal(k_x2, (B2, 3), jnp.float32)
    mean2, std2 = policy_forward(x2, params, block_b=8)
    jax.block_until_ready((mean2, std2))
    mean2_ref, std2_ref = policy_forward_ref(x2, params)
    assert mean2.shape == (B2, 1) and std2.shape == (B2, 1)
    assert jnp.allclose(mean2, mean2_ref, atol=1e-5, rtol=1e-5)
    assert jnp.allclose(std2, std2_ref, atol=1e-5, rtol=1e-5)

    # Optional bf16 MXU path for the 128x128 layer (looser tolerance).
    mean_bf, std_bf = policy_forward(x, params, use_bf16_matmul=True)
    jax.block_until_ready((mean_bf, std_bf))
    assert jnp.allclose(mean_bf, mean_ref, atol=5e-2)
    assert jnp.allclose(std_bf, std_ref, atol=5e-2)

    print("KERNEL_OK")
</pallas_src>

<mosaic_0001>
module attributes {stable_mosaic.version = 11 : i64} {
  func.func @policy_kernel(%arg0: i32, %arg1: memref<8x3xf32, #tpu.memory_space<vmem>>, %arg2: memref<3x128xf32, #tpu.memory_space<vmem>>, %arg3: memref<1x128xf32, #tpu.memory_space<vmem>>, %arg4: memref<128x128xf32, #tpu.memory_space<vmem>>, %arg5: memref<1x128xf32, #tpu.memory_space<vmem>>, %arg6: memref<128x2xf32, #tpu.memory_space<vmem>>, %arg7: memref<1x2xf32, #tpu.memory_space<vmem>>, %arg8: memref<8x2xf32, #tpu.memory_space<vmem>>) attributes {dimension_semantics = [#tpu.dimension_semantics<parallel>], iteration_bounds = array<i64: 1>, scalar_prefetch = 0 : i64, scratch_operands = 0 : i64, tpu.core_type = #tpu.core_type<tc>, window_params = [{transform_indices = @transform_0, window_bounds = array<i64: 8, 3>}, {pipeline_mode = #tpu.pipeline_mode<synchronous>, transform_indices = @transform_1, window_bounds = array<i64: 3, 128>}, {pipeline_mode = #tpu.pipeline_mode<synchronous>, transform_indices = @transform_2, window_bounds = array<i64: 1, 128>}, {pipeline_mode = #tpu.pipeline_mode<synchronous>, transform_indices = @transform_3, window_bounds = array<i64: 128, 128>}, {pipeline_mode = #tpu.pipeline_mode<synchronous>, transform_indices = @transform_4, window_bounds = array<i64: 1, 128>}, {pipeline_mode = #tpu.pipeline_mode<synchronous>, transform_indices = @transform_5, window_bounds = array<i64: 128, 2>}, {pipeline_mode = #tpu.pipeline_mode<synchronous>, transform_indices = @transform_6, window_bounds = array<i64: 1, 2>}, {transform_indices = @transform_7, window_bounds = array<i64: 8, 2>}]} {
    %c0 = arith.constant 0 : index
    %c0_0 = arith.constant 0 : index
    %0 = vector.load %arg1[%c0, %c0_0] : memref<8x3xf32, #tpu.memory_space<vmem>>, vector<8x3xf32>
    %c0_1 = arith.constant 0 : index
    %c0_2 = arith.constant 0 : index
    %1 = vector.load %arg2[%c0_1, %c0_2] : memref<3x128xf32, #tpu.memory_space<vmem>>, vector<3x128xf32>
    %2 = vector.extract_strided_slice %0 {offsets = [0, 0], sizes = [8, 1], strides = [1, 1]} : vector<8x3xf32> to vector<8x1xf32>
    %3 = vector.extract_strided_slice %1 {offsets = [0, 0], sizes = [1, 128], strides = [1, 1]} : vector<3x128xf32> to vector<1x128xf32>
    %4 = vector.broadcast %2 : vector<8x1xf32> to vector<8x128xf32>
    %5 = vector.broadcast %3 : vector<1x128xf32> to vector<8x128xf32>
    %6 = arith.mulf %4, %5 : vector<8x128xf32>
    %7 = vector.extract_strided_slice %0 {offsets = [0, 1], sizes = [8, 1], strides = [1, 1]} : vector<8x3xf32> to vector<8x1xf32>
    %8 = vector.extract_strided_slice %1 {offsets = [1, 0], sizes = [1, 128], strides = [1, 1]} : vector<3x128xf32> to vector<1x128xf32>
    %9 = vector.broadcast %7 : vector<8x1xf32> to vector<8x128xf32>
    %10 = vector.broadcast %8 : vector<1x128xf32> to vector<8x128xf32>
    %11 = arith.mulf %9, %10 : vector<8x128xf32>
    %12 = arith.addf %6, %11 : vector<8x128xf32>
    %13 = vector.extract_strided_slice %0 {offsets = [0, 2], sizes = [8, 1], strides = [1, 1]} : vector<8x3xf32> to vector<8x1xf32>
    %14 = vector.extract_strided_slice %1 {offsets = [2, 0], sizes = [1, 128], strides = [1, 1]} : vector<3x128xf32> to vector<1x128xf32>
    %15 = vector.broadcast %13 : vector<8x1xf32> to vector<8x128xf32>
    %16 = vector.broadcast %14 : vector<1x128xf32> to vector<8x128xf32>
    %17 = arith.mulf %15, %16 : vector<8x128xf32>
    %18 = arith.addf %12, %17 : vector<8x128xf32>
    %c0_3 = arith.constant 0 : index
    %c0_4 = arith.constant 0 : index
    %19 = vector.load %arg3[%c0_3, %c0_4] : memref<1x128xf32, #tpu.memory_space<vmem>>, vector<1x128xf32>
    %20 = vector.broadcast %19 : vector<1x128xf32> to vector<8x128xf32>
    %21 = arith.addf %18, %20 : vector<8x128xf32>
    %cst = arith.constant 0.000000e+00 : f32
    %22 = vector.broadcast %cst : f32 to vector<8x128xf32>
    %23 = arith.maximumf %21, %22 : vector<8x128xf32>
    %c0_5 = arith.constant 0 : index
    %c0_6 = arith.constant 0 : index
    %24 = vector.load %arg4[%c0_5, %c0_6] : memref<128x128xf32, #tpu.memory_space<vmem>>, vector<128x128xf32>
    %cst_7 = arith.constant dense<0.000000e+00> : vector<8x128xf32>
    %25 = tpu.matmul %23, %24, %cst_7 {dimension_numbers = #tpu.dot_dimension_numbers<[1], [0], [0], [1], [0, 0, 1, 1], [], []>} : vector<8x128xf32>, vector<128x128xf32>, vector<8x128xf32> -> vector<8x128xf32>
    %c0_8 = arith.constant 0 : index
    %c0_9 = arith.constant 0 : index
    %26 = vector.load %arg5[%c0_8, %c0_9] : memref<1x128xf32, #tpu.memory_space<vmem>>, vector<1x128xf32>
    %27 = vector.broadcast %26 : vector<1x128xf32> to vector<8x128xf32>
    %28 = arith.addf %25, %27 : vector<8x128xf32>
    %cst_10 = arith.constant 0.000000e+00 : f32
    %29 = vector.broadcast %cst_10 : f32 to vector<8x128xf32>
    %30 = arith.maximumf %28, %29 : vector<8x128xf32>
    %c0_11 = arith.constant 0 : index
    %c0_12 = arith.constant 0 : index
    %31 = vector.load %arg6[%c0_11, %c0_12] : memref<128x2xf32, #tpu.memory_space<vmem>>, vector<128x2xf32>
    %cst_13 = arith.constant dense<0.000000e+00> : vector<8x2xf32>
    %32 = tpu.matmul %30, %31, %cst_13 {dimension_numbers = #tpu.dot_dimension_numbers<[1], [0], [0], [1], [0, 0, 1, 1], [], []>} : vector<8x128xf32>, vector<128x2xf32>, vector<8x2xf32> -> vector<8x2xf32>
    %c0_14 = arith.constant 0 : index
    %c0_15 = arith.constant 0 : index
    %33 = vector.load %arg7[%c0_14, %c0_15] : memref<1x2xf32, #tpu.memory_space<vmem>>, vector<1x2xf32>
    %34 = vector.broadcast %33 : vector<1x2xf32> to vector<8x2xf32>
    %35 = arith.addf %32, %34 : vector<8x2xf32>
    %36 = math.tanh %35 : vector<8x2xf32>
    %37 = tpu.iota {dimensions = array<i32: 1>} : vector<8x2xi32>
    %c0_i32 = arith.constant 0 : i32
    %38 = vector.broadcast %c0_i32 : i32 to vector<8x2xi32>
    %39 = arith.cmpi eq, %37, %38 : vector<8x2xi32>
    %cst_16 = arith.constant 2.000000e+00 : f32
    %40 = vector.broadcast %cst_16 : f32 to vector<8x2xf32>
    %41 = arith.mulf %40, %36 : vector<8x2xf32>
    %42 = arith.mulf %36, %36 : vector<8x2xf32>
    %43 = arith.select %39, %41, %42 : vector<8x2xi1>, vector<8x2xf32>
    %c0_17 = arith.constant 0 : index
    %c0_18 = arith.constant 0 : index
    %44 = vector.load %arg8[%c0_17, %c0_18] : memref<8x2xf32, #tpu.memory_space<vmem>>, vector<8x2xf32>
    tpu.vector_store %arg8[%c0_17, %c0_18], %43 {strides = array<i32>} : memref<8x2xf32, #tpu.memory_space<vmem>>, vector<8x2xf32>,
    return
  }
  func.func @transform_0(%arg0: i32) -> (i32, i32) {
    %c0_i32 = arith.constant 0 : i32
    %c0_i32_0 = arith.constant 0 : i32
    return %arg0, %c0_i32 : i32, i32
  }
  func.func @transform_1(%arg0: i32) -> (i32, i32) {
    %c0_i32 = arith.constant 0 : i32
    %c0_i32_0 = arith.constant 0 : i32
    %c0_i32_1 = arith.constant 0 : i32
    return %c0_i32, %c0_i32_0 : i32, i32
  }
  func.func @transform_2(%arg0: i32) -> (i32, i32) {
    %c0_i32 = arith.constant 0 : i32
    %c0_i32_0 = arith.constant 0 : i32
    %c0_i32_1 = arith.constant 0 : i32
    return %c0_i32, %c0_i32_0 : i32, i32
  }
  func.func @transform_3(%arg0: i32) -> (i32, i32) {
    %c0_i32 = arith.constant 0 : i32
    %c0_i32_0 = arith.constant 0 : i32
    %c0_i32_1 = arith.constant 0 : i32
    return %c0_i32, %c0_i32_0 : i32, i32
  }
  func.func @transform_4(%arg0: i32) -> (i32, i32) {
    %c0_i32 = arith.constant 0 : i32
    %c0_i32_0 = arith.constant 0 : i32
    %c0_i32_1 = arith.constant 0 : i32
    return %c0_i32, %c0_i32_0 : i32, i32
  }
  func.func @transform_5(%arg0: i32) -> (i32, i32) {
    %c0_i32 = arith.constant 0 : i32
    %c0_i32_0 = arith.constant 0 : i32
    %c0_i32_1 = arith.constant 0 : i32
    return %c0_i32, %c0_i32_0 : i32, i32
  }
  func.func @transform_6(%arg0: i32) -> (i32, i32) {
    %c0_i32 = arith.constant 0 : i32
    %c0_i32_0 = arith.constant 0 : i32
    %c0_i32_1 = arith.constant 0 : i32
    return %c0_i32, %c0_i32_0 : i32, i32
  }
  func.func @transform_7(%arg0: i32) -> (i32, i32) {
    %c0_i32 = arith.constant 0 : i32
    %c0_i32_0 = arith.constant 0 : i32
    return %arg0, %c0_i32 : i32, i32
  }
}

</mosaic_0001>

<llo_original>
// kernel: tpu_custom_call.1
$region0: #{tpu_custom_call.1}
  #allocation0 [shape = 'u32[]', space=smem, size = 0x4, offset = 0x4, fixed_abs, tag = 'smem constant byte address 0x4 - core index']
  #allocation1 [shape = 'u32[144,128]{1,0:T(1,128)}', space=vmem, size = 0x12000, scoped, tag = 'internal scratch']
  %s0 = inlined_call_operand.vmem [shape: f32[8,3], index: 0, kind: input, shape index: {}]
  %s1 = inlined_call_operand.vmem [shape: f32[3,128], index: 1, kind: input, shape index: {}]
  %s2 = inlined_call_operand.vmem [shape: f32[1,128], index: 2, kind: input, shape index: {}]
  %s3 = inlined_call_operand.vmem [shape: f32[128,128], index: 3, kind: input, shape index: {}]
  %s4 = inlined_call_operand.vmem [shape: f32[1,128], index: 4, kind: input, shape index: {}]
  %s5 = inlined_call_operand.vmem [shape: f32[128,2], index: 5, kind: input, shape index: {}]
  %s6 = inlined_call_operand.vmem [shape: f32[1,2], index: 6, kind: input, shape index: {}]
  %s7 = inlined_call_operand.vmem [shape: f32[8,2], index: 7, kind: output, shape index: {}]
  %s8 = sld [smem:[#allocation0]]
  $region38: #{tpu_custom_call.1} parent=0
    _
  %s10 = ssub.s32 1, %s8
  %s11 = scalar_select 0, %s10, %s8
  // Predicated region
  $region2: #{tpu_custom_call.1} parent=0 // pred_check
    _
  $region3: #{tpu_custom_call.1} parent=0 // pred_check_branch
    %13 = sbr.rel (0) target = $region5
  $region4: #{tpu_custom_call.1} parent=0 // pred_region
    _
  $region5: #{tpu_custom_call.1} parent=0 // pred_fallthru
    _
  // Predicated region
  $region6: #{tpu_custom_call.1} parent=0 // pred_check
    _
  $region7: #{tpu_custom_call.1} parent=0 // pred_check_branch
    %15 = sbr.rel (0) target = $region9
  $region8: #{tpu_custom_call.1} parent=0 // pred_region
    _
  $region9: #{tpu_custom_call.1} parent=0 // pred_fallthru
    _
  // Predicated region
  $region10: #{tpu_custom_call.1} parent=0 // pred_check
    _
  $region11: #{tpu_custom_call.1} parent=0 // pred_check_branch
    %17 = sbr.rel (0) target = $region13
  $region12: #{tpu_custom_call.1} parent=0 // pred_region
    _
  $region13: #{tpu_custom_call.1} parent=0 // pred_fallthru
    _
  // Predicated region
  $region14: #{tpu_custom_call.1} parent=0 // pred_check
    _
  $region15: #{tpu_custom_call.1} parent=0 // pred_check_branch
    %19 = sbr.rel (0) target = $region17
  $region16: #{tpu_custom_call.1} parent=0 // pred_region
    _
  $region17: #{tpu_custom_call.1} parent=0 // pred_fallthru
    _
  // Predicated region
  $region18: #{tpu_custom_call.1} parent=0 // pred_check
    _
  $region19: #{tpu_custom_call.1} parent=0 // pred_check_branch
    %21 = sbr.rel (0) target = $region21
  $region20: #{tpu_custom_call.1} parent=0 // pred_region
    _
  $region21: #{tpu_custom_call.1} parent=0 // pred_fallthru
    _
  // Predicated region
  $region22: #{tpu_custom_call.1} parent=0 // pred_check
    _
  $region23: #{tpu_custom_call.1} parent=0 // pred_check_branch
    %23 = sbr.rel (0) target = $region25
  $region24: #{tpu_custom_call.1} parent=0 // pred_region
    _
  $region25: #{tpu_custom_call.1} parent=0 // pred_fallthru
    _
  // Predicated region
  $region26: #{tpu_custom_call.1} parent=0 // pred_check
    _
  $region27: #{tpu_custom_call.1} parent=0 // pred_check_branch
    %25 = sbr.rel (0) target = $region29
  $region28: #{tpu_custom_call.1} parent=0 // pred_region
    _
  $region29: #{tpu_custom_call.1} parent=0 // pred_fallthru
    _
  %v26 = vld [vmem:[%s0] sm:$0xff]
  %v27 = vld [vmem:[%s1] sm:$0x7]
  %29 = vset.pattern.permute.xlu0 0
  %30 = vperm.xlu0 %29, %v26
  %v31 = vpop.permute.xlu0 %30
  %v33 = vlaneseq
  %v34 = vshrl.u32 %v33, 7
  %v35 = vsub.s32 0, %v34
  %v36 = vrot.slane %v27, %v35
  %v37 = vmul.f32 %v31, %v36
  %38 = vset.pattern.permute.xlu0 1
  %39 = vperm.xlu0 %38, %v26
  %v40 = vpop.permute.xlu0 %39
  %v42 = vlaneseq
  %v43 = vshrl.u32 %v42, 7
  %v44 = vsub.s32 1, %v43
  %v45 = vrot.slane %v27, %v44
  %v46 = vmul.f32 %v40, %v45
  %v47 = vadd.f32 %v37, %v46
  %48 = vset.pattern.permute.xlu0 2
  %49 = vperm.xlu0 %48, %v26
  %v50 = vpop.permute.xlu0 %49
  %v52 = vlaneseq
  %v53 = vshrl.u32 %v52, 7
  %v54 = vsub.s32 2, %v53
  %v55 = vrot.slane %v27, %v54
  %v56 = vmul.f32 %v50, %v55
  %v57 = vadd.f32 %v47, %v56
  %v58 = vld [vmem:[%s2] sm:$0x1]
  %v60 = vlaneseq
  %v61 = vshrl.u32 %v60, 7
  %v62 = vsub.s32 0, %v61
  %v63 = vrot.slane %v58, %v62
  %v65 = vadd.f32 %v57, %v63
  %v66 = vmax.f32 %v65, 0.0
  %v67 = vld [vmem:[%s3] sm:$0xff]
  %v68 = vld [vmem:[%s3 + $0x8] sm:$0xff]
  %v69 = vld [vmem:[%s3 + $0x10] sm:$0xff]
  %v70 = vld [vmem:[%s3 + $0x18] sm:$0xff]
  %v71 = vld [vmem:[%s3 + $0x20] sm:$0xff]
  %v72 = vld [vmem:[%s3 + $0x28] sm:$0xff]
  %v73 = vld [vmem:[%s3 + $0x30] sm:$0xff]
  %v74 = vld [vmem:[%s3 + $0x38] sm:$0xff]
  %v75 = vld [vmem:[%s3 + $0x40] sm:$0xff]
  %v76 = vld [vmem:[%s3 + $0x48] sm:$0xff]
  %v77 = vld [vmem:[%s3 + $0x50] sm:$0xff]
  %v78 = vld [vmem:[%s3 + $0x58] sm:$0xff]
  %v79 = vld [vmem:[%s3 + $0x60] sm:$0xff]
  %v80 = vld [vmem:[%s3 + $0x68] sm:$0xff]
  %v81 = vld [vmem:[%s3 + $0x70] sm:$0xff]
  %v82 = vld [vmem:[%s3 + $0x78] sm:$0xff]
  %v83 = vld [vmem:[%s4] sm:$0x1]
  %v85 = vlaneseq
  %v86 = vshrl.u32 %v85, 7
  %v87 = vsub.s32 0, %v86
  %v88 = vrot.slane %v83, %v87
  %90 = vmatprep.subr.mxu0 0.0
  %91 = vmatpush1.msra.mxu0 %v67
  %92 = vmatprep.subr.mxu0 0.0
  %93 = vmatpush1.msra.mxu0 %v68
  %94 = vmatprep.subr.mxu0 0.0
  %95 = vmatpush1.msra.mxu0 %v69
  %96 = vmatprep.subr.mxu0 0.0
  %97 = vmatpush1.msra.mxu0 %v70
  %98 = vmatprep.subr.mxu0 0.0
  %99 = vmatpush1.msra.mxu0 %v71
  %100 = vmatprep.subr.mxu0 0.0
  %101 = vmatpush1.msra.mxu0 %v72
  %102 = vmatprep.subr.mxu0 0.0
  %103 = vmatpush1.msra.mxu0 %v73
  %104 = vmatprep.subr.mxu0 0.0
  %105 = vmatpush1.msra.mxu0 %v74
  %106 = vmatprep.subr.mxu0 0.0
  %107 = vmatpush1.msra.mxu0 %v75
  %108 = vmatprep.subr.mxu0 0.0
  %109 = vmatpush1.msra.mxu0 %v76
  %110 = vmatprep.subr.mxu0 0.0
  %111 = vmatpush1.msra.mxu0 %v77
  %112 = vmatprep.subr.mxu0 0.0
  %113 = vmatpush1.msra.mxu0 %v78
  %114 = vmatprep.subr.mxu0 0.0
  %115 = vmatpush1.msra.mxu0 %v79
  %116 = vmatprep.subr.mxu0 0.0
  %117 = vmatpush1.msra.mxu0 %v80
  %118 = vmatprep.subr.mxu0 0.0
  %119 = vmatpush1.msra.mxu0 %v81
  %120 = vmatprep.subr.mxu0 0.0
  %121 = vmatpush1.msra.mxu0 %v82
  %122 = vmatprep.subr.mxu0 0.0
  %123 = vmatpush1.msra.mxu0 0.0
  %124 = vmatprep.subr.mxu0 0.0
  %125 = vmatpush1.msra.mxu0 0.0
  %126 = vmatprep.subr.mxu0 0.0
  %127 = vmatpush1.msra.mxu0 0.0
  %128 = vmatprep.subr.mxu0 0.0
  %129 = vmatpush1.msra.mxu0 0.0
  %130 = vmatprep.subr.mxu0 0.0
  %131 = vmatpush1.msra.mxu0 0.0
  %132 = vmatprep.subr.mxu0 0.0
  %133 = vmatpush1.msra.mxu0 0.0
  %134 = vmatprep.subr.mxu0 0.0
  %135 = vmatpush1.msra.mxu0 0.0
  %136 = vmatprep.subr.mxu0 0.0
  %137 = vmatpush1.msra.mxu0 0.0
  %138 = vmatprep.subr.mxu0 0.0
  %139 = vmatpush1.msra.mxu0 0.0
  %140 = vmatprep.subr.mxu0 0.0
  %141 = vmatpush1.msra.mxu0 0.0
  %142 = vmatprep.subr.mxu0 0.0
  %143 = vmatpush1.msra.mxu0 0.0
  %144 = vmatprep.subr.mxu0 0.0
  %145 = vmatpush1.msra.mxu0 0.0
  %146 = vmatprep.subr.mxu0 0.0
  %147 = vmatpush1.msra.mxu0 0.0
  %148 = vmatprep.subr.mxu0 0.0
  %149 = vmatpush1.msra.mxu0 0.0
  %150 = vmatprep.subr.mxu0 0.0
  %151 = vmatpush1.msra.mxu0 0.0
  %152 = vmatprep.subr.mxu0 0.0
  %153 = vmatpush1.msra.mxu0 0.0
  %154 = vmatprep.mubr.f32.mxu0 0.0
  %155 = vmatmul.mubr.f32.gmra.mrb[0].mxu0 %v66
  %v156 = vpop.f32.mrb[0].mxu0
  %v157 = vadd.f32 %v88, %v156
  %v158 = vpop.f32.mrb[0].mxu0
  %159 = vdwg.mxu0
  %v160 = vmax.f32 %v157, 0.0
  %v161 = vld [vmem:[%s5] sm:$0xff]
  %v162 = vld [vmem:[%s5 + $0x8] sm:$0xff]
  %v163 = vld [vmem:[%s5 + $0x10] sm:$0xff]
  %v164 = vld [vmem:[%s5 + $0x18] sm:$0xff]
  %v165 = vld [vmem:[%s5 + $0x20] sm:$0xff]
  %v166 = vld [vmem:[%s5 + $0x28] sm:$0xff]
  %v167 = vld [vmem:[%s5 + $0x30] sm:$0xff]
  %v168 = vld [vmem:[%s5 + $0x38] sm:$0xff]
  %v169 = vld [vmem:[%s5 + $0x40] sm:$0xff]
  %v170 = vld [vmem:[%s5 + $0x48] sm:$0xff]
  %v171 = vld [vmem:[%s5 + $0x50] sm:$0xff]
  %v172 = vld [vmem:[%s5 + $0x58] sm:$0xff]
  %v173 = vld [vmem:[%s5 + $0x60] sm:$0xff]
  %v174 = vld [vmem:[%s5 + $0x68] sm:$0xff]
  %v175 = vld [vmem:[%s5 + $0x70] sm:$0xff]
  %v176 = vld [vmem:[%s5 + $0x78] sm:$0xff]
  %v177 = vld [vmem:[%s6] sm:$0x1]
  %v179 = vlaneseq
  %v180 = vshrl.u32 %v179, 7
  %v181 = vsub.s32 0, %v180
  %v182 = vrot.slane %v177, %v181
  %184 = vmatprep.subr.mxu0 0.0
  %185 = vmatpush1.msra.mxu0 %v161
  %186 = vmatprep.subr.mxu0 0.0
  %187 = vmatpush1.msra.mxu0 %v162
  %188 = vmatprep.subr.mxu0 0.0
  %189 = vmatpush1.msra.mxu0 %v163
  %190 = vmatprep.subr.mxu0 0.0
  %191 = vmatpush1.msra.mxu0 %v164
  %192 = vmatprep.subr.mxu0 0.0
  %193 = vmatpush1.msra.mxu0 %v165
  %194 = vmatprep.subr.mxu0 0.0
  %195 = vmatpush1.msra.mxu0 %v166
  %196 = vmatprep.subr.mxu0 0.0
  %197 = vmatpush1.msra.mxu0 %v167
  %198 = vmatprep.subr.mxu0 0.0
  %199 = vmatpush1.msra.mxu0 %v168
  %200 = vmatprep.subr.mxu0 0.0
  %201 = vmatpush1.msra.mxu0 %v169
  %202 = vmatprep.subr.mxu0 0.0
  %203 = vmatpush1.msra.mxu0 %v170
  %204 = vmatprep.subr.mxu0 0.0
  %205 = vmatpush1.msra.mxu0 %v171
  %206 = vmatprep.subr.mxu0 0.0
  %207 = vmatpush1.msra.mxu0 %v172
  %208 = vmatprep.subr.mxu0 0.0
  %209 = vmatpush1.msra.mxu0 %v173
  %210 = vmatprep.subr.mxu0 0.0
  %211 = vmatpush1.msra.mxu0 %v174
  %212 = vmatprep.subr.mxu0 0.0
  %213 = vmatpush1.msra.mxu0 %v175
  %214 = vmatprep.subr.mxu0 0.0
  %215 = vmatpush1.msra.mxu0 %v176
  %216 = vmatprep.subr.mxu0 0.0
  %217 = vmatpush1.msra.mxu0 0.0
  %218 = vmatprep.subr.mxu0 0.0
  %219 = vmatpush1.msra.mxu0 0.0
  %220 = vmatprep.subr.mxu0 0.0
  %221 = vmatpush1.msra.mxu0 0.0
  %222 = vmatprep.subr.mxu0 0.0
  %223 = vmatpush1.msra.mxu0 0.0
  %224 = vmatprep.subr.mxu0 0.0
  %225 = vmatpush1.msra.mxu0 0.0
  %226 = vmatprep.subr.mxu0 0.0
  %227 = vmatpush1.msra.mxu0 0.0
  %228 = vmatprep.subr.mxu0 0.0
  %229 = vmatpush1.msra.mxu0 0.0
  %230 = vmatprep.subr.mxu0 0.0
  %231 = vmatpush1.msra.mxu0 0.0
  %232 = vmatprep.subr.mxu0 0.0
  %233 = vmatpush1.msra.mxu0 0.0
  %234 = vmatprep.subr.mxu0 0.0
  %235 = vmatpush1.msra.mxu0 0.0
  %236 = vmatprep.subr.mxu0 0.0
  %237 = vmatpush1.msra.mxu0 0.0
  %238 = vmatprep.subr.mxu0 0.0
  %239 = vmatpush1.msra.mxu0 0.0
  %240 = vmatprep.subr.mxu0 0.0
  %241 = vmatpush1.msra.mxu0 0.0
  %242 = vmatprep.subr.mxu0 0.0
  %243 = vmatpush1.msra.mxu0 0.0
  %244 = vmatprep.subr.mxu0 0.0
  %245 = vmatpush1.msra.mxu0 0.0
  %246 = vmatprep.subr.mxu0 0.0
  %247 = vmatpush1.msra.mxu0 0.0
  %248 = vmatprep.mubr.f32.mxu0 0.0
  %249 = vmatmul.mubr.f32.gmra.mrb[0].mxu0 %v160
  %v250 = vpop.f32.mrb[0].mxu0
  %v251 = vadd.f32 %v182, %v250
  %v252 = vpop.f32.mrb[0].mxu0
  %253 = vdwg.mxu0
  %v254 = vtanh.pop %v251
  %v255 = vlaneseq
  %v256 = vand.u32 %v255, 127
  %vm257 = vcmp.eq.s32.totalorder %v256, 0
  %v258 = vmul.f32 %v254, 2.0
  %v259 = vmul.f32 %v254, %v254
  %v260 = vsel %vm257, %v258, %v259
  %vm261 = vcmask 15360
  %262 = vst.msk [vmem:[%s7] sm:$0xff] %vm261, %v260
  // Predicated region
  $region30: #{tpu_custom_call.1} parent=0 // pred_check
    _
  $region31: #{tpu_custom_call.1} parent=0 // pred_check_branch
    %264 = sbr.rel (0) target = $region33
  $region32: #{tpu_custom_call.1} parent=0 // pred_region
    _
  $region33: #{tpu_custom_call.1} parent=0 // pred_fallthru
    _
  // Predicated region
  $region34: #{tpu_custom_call.1} parent=0 // pred_check
    _
  $region35: #{tpu_custom_call.1} parent=0 // pred_check_branch
    %266 = sbr.rel (0) target = $region37
  $region36: #{tpu_custom_call.1} parent=0 // pred_region
    _
  $region37: #{tpu_custom_call.1} parent=0 // pred_fallthru
    _

</llo_original>
